<compile_context>
chip_gen: v7x
topology: tpu7x:2x2x1
jax: 0.10.0
libtpu: 0.0.40
codegen_flags: <defaults>
</compile_context>

<pallas_src>
import functools

import jax
import jax.numpy as jnp
from jax.experimental import pallas as pl
from jax.experimental.pallas import tpu as pltpu


def _round_up(x, m):
    return (x + m - 1) // m * m


def _choose_tm(batch):
    # 256-row tiles fill the v6e/v7x 256x256 MXU (also fine on v5e's 128x128);
    # tiny batches run as a single full-batch tile padded to the f32 sublane
    # granule of 8. NOTE: at batch=8 the kernel is launch-overhead bound —
    # callers should pack many DDI pairs into one call to amortize.
    if batch >= 256:
        return 256
    return _round_up(max(batch, 1), 8)


# ----------------------------------------------------------------------------
# Kernels
# ----------------------------------------------------------------------------
def _fused_ffnn_kernel(num_hidden, *refs):
    """GNN embed (stand-in Linear) + full fc head, fused. One grid step = TM rows.

    refs = (m1, m2, gnn_w, gnn_b, fc_w1, fc_b1,
            [wh_i, bh_i] * num_hidden, w_out_row, b_out,      # inputs
            pred, e1, e2)                                     # outputs
    """
    n_in = 8 + 2 * num_hidden
    m1_ref, m2_ref, gw_ref, gb_ref, w1_ref, b1_ref = refs[:6]
    hidden_refs = refs[6:6 + 2 * num_hidden]
    wout_ref, bout_ref = refs[n_in - 2:n_in]
    pred_ref, e1_ref, e2_ref = refs[n_in:]

    tm = m1_ref.shape[0]
    embed_dim = gw_ref.shape[1]

    # GNN stand-in: one stacked (2*TM, F) @ (F, E) matmul for both molecules
    # (doubles sublane occupancy vs two separate TM-row matmuls).
    x = jnp.concatenate([m1_ref[...], m2_ref[...]], axis=0)
    e_all = (jnp.dot(x, gw_ref[...], preferred_element_type=jnp.float32)
             + gb_ref[...])
    e1 = e_all[:tm, :]
    e2 = e_all[tm:, :]
    e1_ref[...] = e1
    e2_ref[...] = e2

    # fc layer 1: torch.cat((e1, e2), dim=1) @ W1 folded into two dots against
    # static in-kernel slices of the VMEM-resident W1 (free views, no HBM copy).
    h = (jnp.dot(e1, w1_ref[:embed_dim, :], preferred_element_type=jnp.float32)
         + jnp.dot(e2, w1_ref[embed_dim:, :], preferred_element_type=jnp.float32)
         + b1_ref[...])
    h = jnp.maximum(h, 0.0)  # activation_fn = ReLU

    # (num_layers - 2) hidden Linear + ReLU blocks (static Python loop).
    for i in range(num_hidden):
        w = hidden_refs[2 * i][...]
        b = hidden_refs[2 * i + 1][...]
        h = jnp.maximum(
            jnp.dot(h, w, preferred_element_type=jnp.float32) + b, 0.0)

    # Final Linear(H, 1): VPU multiply + lane reduce instead of a 1-lane MXU pass.
    logit = jnp.sum(h * wout_ref[...], axis=-1, keepdims=True) + bout_ref[...]
    # Numerically stable sigmoid (tanh form — EUP slot, no exp overflow).
    pred_ref[...] = 0.5 * (jnp.tanh(0.5 * logit) + 1.0)


def _embed_kernel(m1_ref, m2_ref, gw_ref, gb_ref, e1_ref, e2_ref):
    """Embedding-only path (return_embed=True), same stacked matmul."""
    tm = m1_ref.shape[0]
    x = jnp.concatenate([m1_ref[...], m2_ref[...]], axis=0)
    e_all = (jnp.dot(x, gw_ref[...], preferred_element_type=jnp.float32)
             + gb_ref[...])
    e1_ref[...] = e_all[:tm, :]
    e2_ref[...] = e_all[tm:, :]


# ----------------------------------------------------------------------------
# Wrapper
# ----------------------------------------------------------------------------
def ffnn_forward(molecule1, molecule2, params, return_embed=False, tm=None):
    """Mirrors FFNN.forward semantics with a single fused Pallas kernel."""
    batch, feat_dim = molecule1.shape
    embed_dim = params["gnn_w"].shape[1]
    hidden_dim = params["fc_w1"].shape[1]
    num_hidden = len(params["fc_hidden"])

    if tm is None:
        tm = _choose_tm(batch)
    b_pad = _round_up(batch, tm)
    if b_pad != batch:
        pad = ((0, b_pad - batch), (0, 0))
        molecule1 = jnp.pad(molecule1, pad)
        molecule2 = jnp.pad(molecule2, pad)
    grid = (b_pad // tm,)

    def batch_spec(width):
        return pl.BlockSpec((tm, width), lambda i: (i, 0))

    def resident_spec(arr):
        # Constant block index across the grid -> weight DMA'd once, stays
        # VMEM-resident across all batch tiles.
        return pl.BlockSpec(arr.shape, lambda i: (0, 0))

    feat_spec = batch_spec(feat_dim)
    compiler_params = pltpu.CompilerParams(
        # Single TC on v5e/v6e; shards batch tiles across both v7x TensorCores.
        dimension_semantics=("parallel",),
        # NOTE: weights here are ~0.2 MiB; if hidden_dim / num_layers grow,
        # re-check the resident-weight VMEM budget (64 MiB physical on v7x)
        # and set vmem_limit_bytes / tile the layer chain accordingly.
    )

    if return_embed:
        e1, e2 = pl.pallas_call(
            _embed_kernel,
            grid=grid,
            out_shape=(
                jax.ShapeDtypeStruct((b_pad, embed_dim), jnp.float32),
                jax.ShapeDtypeStruct((b_pad, embed_dim), jnp.float32),
            ),
            in_specs=[feat_spec, feat_spec,
                      resident_spec(params["gnn_w"]),
                      resident_spec(params["gnn_b"])],
            out_specs=(batch_spec(embed_dim), batch_spec(embed_dim)),
            compiler_params=compiler_params,
        )(molecule1, molecule2, params["gnn_w"], params["gnn_b"])
        # torch.cat((embed_1, embed_2), dim=1) -- plain JAX glue.
        return jnp.concatenate([e1[:batch], e2[:batch]], axis=1)

    # (H, 1) column -> (1, H) row so the final layer is a lane reduction.
    w_out_row = params["fc_w_out"].reshape(1, hidden_dim)

    weights = [params["gnn_w"], params["gnn_b"],
               params["fc_w1"], params["fc_b1"]]
    for wh, bh in params["fc_hidden"]:
        weights.extend([wh, bh])
    weights.extend([w_out_row, params["fc_b_out"]])

    operands = [molecule1, molecule2] + weights
    in_specs = [feat_spec, feat_spec] + [resident_spec(w) for w in weights]

    pred, e1, e2 = pl.pallas_call(
        functools.partial(_fused_ffnn_kernel, num_hidden),
        grid=grid,
        out_shape=(
            jax.ShapeDtypeStruct((b_pad, 1), jnp.float32),
            jax.ShapeDtypeStruct((b_pad, embed_dim), jnp.float32),
            jax.ShapeDtypeStruct((b_pad, embed_dim), jnp.float32),
        ),
        in_specs=in_specs,
        out_specs=(batch_spec(1), batch_spec(embed_dim), batch_spec(embed_dim)),
        compiler_params=compiler_params,
    )(*operands)

    return pred[:batch], e1[:batch], e2[:batch]


# ----------------------------------------------------------------------------
# Deterministic parameter construction
# ----------------------------------------------------------------------------
def init_params(key, feat_dim, embed_dim, hidden_dim, num_layers):
    keys = jax.random.split(key, 4 + 2 * (num_layers - 2))
    k = iter(keys)

    def lin(kk, fan_in, fan_out):
        kw, kb = jax.random.split(kk)
        scale = 1.0 / jnp.sqrt(fan_in)
        w = jax.random.uniform(kw, (fan_in, fan_out), jnp.float32, -scale, scale)
        b = jax.random.uniform(kb, (1, fan_out), jnp.float32, -scale, scale)
        return w, b

    gnn_w, gnn_b = lin(next(k), feat_dim, embed_dim)
    fc_w1, fc_b1 = lin(next(k), 2 * embed_dim, hidden_dim)
    fc_hidden = [lin(next(k), hidden_dim, hidden_dim) for _ in range(num_layers - 2)]
    fc_w_out, fc_b_out = lin(next(k), hidden_dim, 1)

    return {
        "gnn_w": gnn_w,
        "gnn_b": gnn_b,
        "fc_w1": fc_w1,
        "fc_b1": fc_b1,
        "fc_hidden": fc_hidden,
        "fc_w_out": fc_w_out,
        "fc_b_out": fc_b_out,
    }


# ----------------------------------------------------------------------------
# Pure-JAX reference for the correctness check
# ----------------------------------------------------------------------------
def ffnn_reference(molecule1, molecule2, params):
    e1 = molecule1 @ params["gnn_w"] + params["gnn_b"]
    e2 = molecule2 @ params["gnn_w"] + params["gnn_b"]
    h = jnp.concatenate([e1, e2], axis=1)
    h = jnp.maximum(h @ params["fc_w1"] + params["fc_b1"], 0.0)
    for wh, bh in params["fc_hidden"]:
        h = jnp.maximum(h @ wh + bh, 0.0)
    logit = h @ params["fc_w_out"] + params["fc_b_out"]
    return jax.nn.sigmoid(logit), e1, e2


# ----------------------------------------------------------------------------
if __name__ == "__main__":
    BATCH = 8          # DDI pairs
    FEAT_DIM = 32      # stand-in molecule feature width
    EMBED_DIM = 64
    HIDDEN_DIM = 128
    NUM_LAYERS = 3     # Linear(2E,H)+ReLU, 1x Linear(H,H)+ReLU, Linear(H,1)+Sigmoid

    key = jax.random.PRNGKey(0)
    k_par, k_m1, k_m2 = jax.random.split(key, 3)

    params = init_params(k_par, FEAT_DIM, EMBED_DIM, HIDDEN_DIM, NUM_LAYERS)
    molecule1 = jax.random.normal(k_m1, (BATCH, FEAT_DIM), jnp.float32)
    molecule2 = jax.random.normal(k_m2, (BATCH, FEAT_DIM), jnp.float32)

    pred, e1, e2 = ffnn_forward(molecule1, molecule2, params)
    jax.block_until_ready((pred, e1, e2))

    # return_embed=True branch
    concat_embed = ffnn_forward(molecule1, molecule2, params, return_embed=True)
    jax.block_until_ready(concat_embed)

    # Check against pure-JAX reference.
    ref_pred, ref_e1, ref_e2 = ffnn_reference(molecule1, molecule2, params)
    assert pred.shape == (BATCH, 1)
    assert concat_embed.shape == (BATCH, 2 * EMBED_DIM)
    assert jnp.allclose(pred, ref_pred, atol=2e-5, rtol=2e-5)
    assert jnp.allclose(e1, ref_e1, atol=2e-5, rtol=2e-5)
    assert jnp.allclose(e2, ref_e2, atol=2e-5, rtol=2e-5)
    assert jnp.allclose(concat_embed,
                        jnp.concatenate([ref_e1, ref_e2], axis=1),
                        atol=2e-5, rtol=2e-5)

    print("KERNEL_OK")
</pallas_src>

<mosaic_0001>
module attributes {stable_mosaic.version = 11 : i64} {
  func.func @_fused_ffnn_kernel(%arg0: i32, %arg1: memref<8x32xf32, #tpu.memory_space<vmem>>, %arg2: memref<8x32xf32, #tpu.memory_space<vmem>>, %arg3: memref<32x64xf32, #tpu.memory_space<vmem>>, %arg4: memref<1x64xf32, #tpu.memory_space<vmem>>, %arg5: memref<128x128xf32, #tpu.memory_space<vmem>>, %arg6: memref<1x128xf32, #tpu.memory_space<vmem>>, %arg7: memref<128x128xf32, #tpu.memory_space<vmem>>, %arg8: memref<1x128xf32, #tpu.memory_space<vmem>>, %arg9: memref<1x128xf32, #tpu.memory_space<vmem>>, %arg10: memref<1x1xf32, #tpu.memory_space<vmem>>, %arg11: memref<8x1xf32, #tpu.memory_space<vmem>>, %arg12: memref<8x64xf32, #tpu.memory_space<vmem>>, %arg13: memref<8x64xf32, #tpu.memory_space<vmem>>) attributes {dimension_semantics = [#tpu.dimension_semantics<parallel>], iteration_bounds = array<i64: 1>, scalar_prefetch = 0 : i64, scratch_operands = 0 : i64, tpu.core_type = #tpu.core_type<tc>, window_params = [{transform_indices = @transform_0, window_bounds = array<i64: 8, 32>}, {transform_indices = @transform_1, window_bounds = array<i64: 8, 32>}, {pipeline_mode = #tpu.pipeline_mode<synchronous>, transform_indices = @transform_2, window_bounds = array<i64: 32, 64>}, {pipeline_mode = #tpu.pipeline_mode<synchronous>, transform_indices = @transform_3, window_bounds = array<i64: 1, 64>}, {pipeline_mode = #tpu.pipeline_mode<synchronous>, transform_indices = @transform_4, window_bounds = array<i64: 128, 128>}, {pipeline_mode = #tpu.pipeline_mode<synchronous>, transform_indices = @transform_5, window_bounds = array<i64: 1, 128>}, {pipeline_mode = #tpu.pipeline_mode<synchronous>, transform_indices = @transform_6, window_bounds = array<i64: 128, 128>}, {pipeline_mode = #tpu.pipeline_mode<synchronous>, transform_indices = @transform_7, window_bounds = array<i64: 1, 128>}, {pipeline_mode = #tpu.pipeline_mode<synchronous>, transform_indices = @transform_8, window_bounds = array<i64: 1, 128>}, {pipeline_mode = #tpu.pipeline_mode<synchronous>, transform_indices = @transform_9, window_bounds = array<i64: 1, 1>}, {transform_indices = @transform_10, window_bounds = array<i64: 8, 1>}, {transform_indices = @transform_11, window_bounds = array<i64: 8, 64>}, {transform_indices = @transform_12, window_bounds = array<i64: 8, 64>}]} {
    %c0 = arith.constant 0 : index
    %c0_0 = arith.constant 0 : index
    %0 = vector.load %arg1[%c0, %c0_0] : memref<8x32xf32, #tpu.memory_space<vmem>>, vector<8x32xf32>
    %c0_1 = arith.constant 0 : index
    %c0_2 = arith.constant 0 : index
    %1 = vector.load %arg2[%c0_1, %c0_2] : memref<8x32xf32, #tpu.memory_space<vmem>>, vector<8x32xf32>
    %2 = tpu.concatenate %0, %1 in 0 : vector<8x32xf32>, vector<8x32xf32> -> vector<16x32xf32>
    %c0_3 = arith.constant 0 : index
    %c0_4 = arith.constant 0 : index
    %3 = vector.load %arg3[%c0_3, %c0_4] : memref<32x64xf32, #tpu.memory_space<vmem>>, vector<32x64xf32>
    %cst = arith.constant dense<0.000000e+00> : vector<16x64xf32>
    %4 = tpu.matmul %2, %3, %cst {dimension_numbers = #tpu.dot_dimension_numbers<[1], [0], [0], [1], [0, 0, 1, 1], [], []>} : vector<16x32xf32>, vector<32x64xf32>, vector<16x64xf32> -> vector<16x64xf32>
    %c0_5 = arith.constant 0 : index
    %c0_6 = arith.constant 0 : index
    %5 = vector.load %arg4[%c0_5, %c0_6] : memref<1x64xf32, #tpu.memory_space<vmem>>, vector<1x64xf32>
    %6 = vector.broadcast %5 : vector<1x64xf32> to vector<16x64xf32>
    %7 = arith.addf %4, %6 : vector<16x64xf32>
    %8 = vector.extract_strided_slice %7 {offsets = [0, 0], sizes = [8, 64], strides = [1, 1]} : vector<16x64xf32> to vector<8x64xf32>
    %9 = vector.extract_strided_slice %7 {offsets = [8, 0], sizes = [8, 64], strides = [1, 1]} : vector<16x64xf32> to vector<8x64xf32>
    %c0_7 = arith.constant 0 : index
    %c0_8 = arith.constant 0 : index
    %10 = vector.load %arg12[%c0_7, %c0_8] : memref<8x64xf32, #tpu.memory_space<vmem>>, vector<8x64xf32>
    tpu.vector_store %arg12[%c0_7, %c0_8], %8 {strides = array<i32>} : memref<8x64xf32, #tpu.memory_space<vmem>>, vector<8x64xf32>,
    %c0_9 = arith.constant 0 : index
    %c0_10 = arith.constant 0 : index
    %11 = vector.load %arg13[%c0_9, %c0_10] : memref<8x64xf32, #tpu.memory_space<vmem>>, vector<8x64xf32>
    tpu.vector_store %arg13[%c0_9, %c0_10], %9 {strides = array<i32>} : memref<8x64xf32, #tpu.memory_space<vmem>>, vector<8x64xf32>,
    %c0_11 = arith.constant 0 : index
    %c0_12 = arith.constant 0 : index
    %12 = vector.load %arg5[%c0_11, %c0_12] : memref<128x128xf32, #tpu.memory_space<vmem>>, vector<64x128xf32>
    %cst_13 = arith.constant dense<0.000000e+00> : vector<8x128xf32>
    %13 = tpu.matmul %8, %12, %cst_13 {dimension_numbers = #tpu.dot_dimension_numbers<[1], [0], [0], [1], [0, 0, 1, 1], [], []>} : vector<8x64xf32>, vector<64x128xf32>, vector<8x128xf32> -> vector<8x128xf32>
    %c64 = arith.constant 64 : index
    %c0_14 = arith.constant 0 : index
    %14 = vector.load %arg5[%c64, %c0_14] : memref<128x128xf32, #tpu.memory_space<vmem>>, vector<64x128xf32>
    %cst_15 = arith.constant dense<0.000000e+00> : vector<8x128xf32>
    %15 = tpu.matmul %9, %14, %cst_15 {dimension_numbers = #tpu.dot_dimension_numbers<[1], [0], [0], [1], [0, 0, 1, 1], [], []>} : vector<8x64xf32>, vector<64x128xf32>, vector<8x128xf32> -> vector<8x128xf32>
    %16 = arith.addf %13, %15 : vector<8x128xf32>
    %c0_16 = arith.constant 0 : index
    %c0_17 = arith.constant 0 : index
    %17 = vector.load %arg6[%c0_16, %c0_17] : memref<1x128xf32, #tpu.memory_space<vmem>>, vector<1x128xf32>
    %18 = vector.broadcast %17 : vector<1x128xf32> to vector<8x128xf32>
    %19 = arith.addf %16, %18 : vector<8x128xf32>
    %cst_18 = arith.constant 0.000000e+00 : f32
    %20 = vector.broadcast %cst_18 : f32 to vector<8x128xf32>
    %21 = arith.maximumf %19, %20 : vector<8x128xf32>
    %c0_19 = arith.constant 0 : index
    %c0_20 = arith.constant 0 : index
    %22 = vector.load %arg7[%c0_19, %c0_20] : memref<128x128xf32, #tpu.memory_space<vmem>>, vector<128x128xf32>
    %c0_21 = arith.constant 0 : index
    %c0_22 = arith.constant 0 : index
    %23 = vector.load %arg8[%c0_21, %c0_22] : memref<1x128xf32, #tpu.memory_space<vmem>>, vector<1x128xf32>
    %cst_23 = arith.constant dense<0.000000e+00> : vector<8x128xf32>
    %24 = tpu.matmul %21, %22, %cst_23 {dimension_numbers = #tpu.dot_dimension_numbers<[1], [0], [0], [1], [0, 0, 1, 1], [], []>} : vector<8x128xf32>, vector<128x128xf32>, vector<8x128xf32> -> vector<8x128xf32>
    %25 = vector.broadcast %23 : vector<1x128xf32> to vector<8x128xf32>
    %26 = arith.addf %24, %25 : vector<8x128xf32>
    %cst_24 = arith.constant 0.000000e+00 : f32
    %27 = vector.broadcast %cst_24 : f32 to vector<8x128xf32>
    %28 = arith.maximumf %26, %27 : vector<8x128xf32>
    %c0_25 = arith.constant 0 : index
    %c0_26 = arith.constant 0 : index
    %29 = vector.load %arg9[%c0_25, %c0_26] : memref<1x128xf32, #tpu.memory_space<vmem>>, vector<1x128xf32>
    %30 = vector.broadcast %29 : vector<1x128xf32> to vector<8x128xf32>
    %31 = arith.mulf %28, %30 : vector<8x128xf32>
    %cst_27 = arith.constant dense<0.000000e+00> : vector<8xf32>
    %32 = vector.multi_reduction <add>, %31, %cst_27 [1] : vector<8x128xf32> to vector<8xf32>
    %33 = vector.shape_cast %32 : vector<8xf32> to vector<8x1xf32>
    %c0_28 = arith.constant 0 : index
    %c0_29 = arith.constant 0 : index
    %34 = vector.load %arg10[%c0_28, %c0_29] : memref<1x1xf32, #tpu.memory_space<vmem>>, vector<1x1xf32>
    %35 = vector.broadcast %34 : vector<1x1xf32> to vector<8x1xf32>
    %36 = arith.addf %33, %35 : vector<8x1xf32>
    %cst_30 = arith.constant 5.000000e-01 : f32
    %37 = vector.broadcast %cst_30 : f32 to vector<8x1xf32>
    %38 = arith.mulf %37, %36 : vector<8x1xf32>
    %39 = math.tanh %38 : vector<8x1xf32>
    %cst_31 = arith.constant 1.000000e+00 : f32
    %40 = vector.broadcast %cst_31 : f32 to vector<8x1xf32>
    %41 = arith.addf %39, %40 : vector<8x1xf32>
    %cst_32 = arith.constant 5.000000e-01 : f32
    %42 = vector.broadcast %cst_32 : f32 to vector<8x1xf32>
    %43 = arith.mulf %42, %41 : vector<8x1xf32>
    %c0_33 = arith.constant 0 : index
    %c0_34 = arith.constant 0 : index
    %44 = vector.load %arg11[%c0_33, %c0_34] : memref<8x1xf32, #tpu.memory_space<vmem>>, vector<8x1xf32>
    tpu.vector_store %arg11[%c0_33, %c0_34], %43 {strides = array<i32>} : memref<8x1xf32, #tpu.memory_space<vmem>>, vector<8x1xf32>,
    return
  }
  func.func @transform_0(%arg0: i32) -> (i32, i32) {
    %c0_i32 = arith.constant 0 : i32
    %c0_i32_0 = arith.constant 0 : i32
    return %arg0, %c0_i32 : i32, i32
  }
  func.func @transform_1(%arg0: i32) -> (i32, i32) {
    %c0_i32 = arith.constant 0 : i32
    %c0_i32_0 = arith.constant 0 : i32
    return %arg0, %c0_i32 : i32, i32
  }
  func.func @transform_2(%arg0: i32) -> (i32, i32) {
    %c0_i32 = arith.constant 0 : i32
    %c0_i32_0 = arith.constant 0 : i32
    %c0_i32_1 = arith.constant 0 : i32
    return %c0_i32, %c0_i32_0 : i32, i32
  }
  func.func @transform_3(%arg0: i32) -> (i32, i32) {
    %c0_i32 = arith.constant 0 : i32
    %c0_i32_0 = arith.constant 0 : i32
    %c0_i32_1 = arith.constant 0 : i32
    return %c0_i32, %c0_i32_0 : i32, i32
  }
  func.func @transform_4(%arg0: i32) -> (i32, i32) {
    %c0_i32 = arith.constant 0 : i32
    %c0_i32_0 = arith.constant 0 : i32
    %c0_i32_1 = arith.constant 0 : i32
    return %c0_i32, %c0_i32_0 : i32, i32
  }
  func.func @transform_5(%arg0: i32) -> (i32, i32) {
    %c0_i32 = arith.constant 0 : i32
    %c0_i32_0 = arith.constant 0 : i32
    %c0_i32_1 = arith.constant 0 : i32
    return %c0_i32, %c0_i32_0 : i32, i32
  }
  func.func @transform_6(%arg0: i32) -> (i32, i32) {
    %c0_i32 = arith.constant 0 : i32
    %c0_i32_0 = arith.constant 0 : i32
    %c0_i32_1 = arith.constant 0 : i32
    return %c0_i32, %c0_i32_0 : i32, i32
  }
  func.func @transform_7(%arg0: i32) -> (i32, i32) {
    %c0_i32 = arith.constant 0 : i32
    %c0_i32_0 = arith.constant 0 : i32
    %c0_i32_1 = arith.constant 0 : i32
    return %c0_i32, %c0_i32_0 : i32, i32
  }
  func.func @transform_8(%arg0: i32) -> (i32, i32) {
    %c0_i32 = arith.constant 0 : i32
    %c0_i32_0 = arith.constant 0 : i32
    %c0_i32_1 = arith.constant 0 : i32
    return %c0_i32, %c0_i32_0 : i32, i32
  }
  func.func @transform_9(%arg0: i32) -> (i32, i32) {
    %c0_i32 = arith.constant 0 : i32
    %c0_i32_0 = arith.constant 0 : i32
    %c0_i32_1 = arith.constant 0 : i32
    return %c0_i32, %c0_i32_0 : i32, i32
  }
  func.func @transform_10(%arg0: i32) -> (i32, i32) {
    %c0_i32 = arith.constant 0 : i32
    %c0_i32_0 = arith.constant 0 : i32
    return %arg0, %c0_i32 : i32, i32
  }
  func.func @transform_11(%arg0: i32) -> (i32, i32) {
    %c0_i32 = arith.constant 0 : i32
    %c0_i32_0 = arith.constant 0 : i32
    return %arg0, %c0_i32 : i32, i32
  }
  func.func @transform_12(%arg0: i32) -> (i32, i32) {
    %c0_i32 = arith.constant 0 : i32
    %c0_i32_0 = arith.constant 0 : i32
    return %arg0, %c0_i32 : i32, i32
  }
}

</mosaic_0001>

<llo_original>
// kernel: tpu_custom_call.1
$region0: #{tpu_custom_call.1}
  #allocation0 [shape = 'u32[]', space=smem, size = 0x4, offset = 0x4, fixed_abs, tag = 'smem constant byte address 0x4 - core index']
  #allocation1 [shape = 'u32[144,128]{1,0:T(1,128)}', space=vmem, size = 0x12000, scoped, tag = 'internal scratch']
  #allocation2 [shape = 'f32[1,1]{1,0:T(1,128)S(1)}', space=vmem, size = 0x200, scoped, tag = 'scoped memory for tpu_custom_call.1']
  %s0 = inlined_call_operand.hbm [shape: f32[8,32], index: 0, kind: input, shape index: {}]
  %s1 = inlined_call_operand.hbm [shape: f32[8,32], index: 1, kind: input, shape index: {}]
  %s2 = inlined_call_operand.hbm [shape: f32[32,64], index: 2, kind: input, shape index: {}]
  %s3 = inlined_call_operand.vmem [shape: f32[1,64], index: 3, kind: input, shape index: {}]
  %s4 = inlined_call_operand.hbm [shape: f32[128,128], index: 4, kind: input, shape index: {}]
  %s5 = inlined_call_operand.vmem [shape: f32[1,128], index: 5, kind: input, shape index: {}]
  %s6 = inlined_call_operand.hbm [shape: f32[128,128], index: 6, kind: input, shape index: {}]
  %s7 = inlined_call_operand.vmem [shape: f32[1,128], index: 7, kind: input, shape index: {}]
  %s8 = inlined_call_operand.vmem [shape: f32[1,128], index: 8, kind: input, shape index: {}]
  %s9 = inlined_call_operand.<no memory space> [shape: f32[1,1], index: 9, kind: input, shape index: {}]
  %s10 = inlined_call_operand.vmem [shape: f32[8,1], index: 10, kind: output, shape index: {0}]
  %s11 = inlined_call_operand.hbm [shape: f32[8,64], index: 11, kind: output, shape index: {1}]
  %s12 = inlined_call_operand.hbm [shape: f32[8,64], index: 12, kind: output, shape index: {2}]
  %13 = xla_tuple %s10, %s11, %s12
  %s14 = sld [smem:[#allocation0]]
  $region86: #{tpu_custom_call.1} parent=0
    _
  %s16 = ssub.s32 1, %s14
  %s17 = scalar_select 0, %s16, %s14
  %v18 = vstv %s9
  %19 = vst [vmem:[#allocation2] sm:$0x1] %v18
  $region1: #{tpu_custom_call.1} parent=0
    #allocation3 [shape = 'u8[4096]{0}', space=vmem, size = 0x1000, scoped, tag = 'input window, operand 0, single buffered']
    #allocation4 [shape = 's32[1]{0}', space=sflag, size = 0x4, scoped, tag = 'scoped memory for tpu_custom_call.1']
    #allocation5 [shape = 's32[1]{0}', space=sflag, size = 0x4, scoped, tag = 'scoped memory for tpu_custom_call.1']
    #allocation6 [shape = 'u8[4096]{0}', space=vmem, size = 0x1000, scoped, tag = 'input window, operand 1, single buffered']
    #allocation7 [shape = 's32[1]{0}', space=sflag, size = 0x4, scoped, tag = 'scoped memory for tpu_custom_call.1']
    #allocation8 [shape = 'u8[16384]{0}', space=vmem, size = 0x4000, scoped, tag = 'input window, operand 2, single buffered']
    #allocation9 [shape = 'u8[65536]{0}', space=vmem, size = 0x10000, scoped, tag = 'input window, operand 4, single buffered']
    #allocation10 [shape = 's32[1]{0}', space=sflag, size = 0x4, scoped, tag = 'scoped memory for tpu_custom_call.1']
    #allocation11 [shape = 'u8[65536]{0}', space=vmem, size = 0x10000, scoped, tag = 'input window, operand 6, single buffered']
    #allocation12 [shape = 'u8[4096]{0}', space=vmem, size = 0x1000, scoped, tag = 'output window, operand 1, single buffered']
    #allocation13 [shape = 'u8[4096]{0}', space=vmem, size = 0x1000, scoped, tag = 'output window, operand 2, single buffered']
    #allocation14 [shape = 's32[1]{0}', space=sflag, size = 0x4, scoped, tag = 'scoped memory for tpu_custom_call.1']
    %20 = vsyncpa [#allocation4], 0
    %21 = vsyncpa [#allocation7], 0
    %22 = vsyncpa [#allocation10], 0
    %23 = vsyncpa [#allocation5], 0
    %24 = vsyncpa [#allocation14], 0
    // Predicated region
    $region2: #{tpu_custom_call.1} parent=1 // pred_check
      _
    $region3: #{tpu_custom_call.1} parent=1 // pred_check_branch
      %26 = sbr.rel (0) target = $region5
    $region4: #{tpu_custom_call.1} parent=1 // pred_region
      %s28 = ssub.s32 128, 128
      %29 = vsyncadd [#allocation4], %s28
      %s31 = sshll.u32 [#allocation3], 4
      %s32 = int_to_ptr.vmem [resolvable:$true] %s31
      %34 = dma.hbm_to_vmem [thread:$0]  %s0, 128, %s32, [#allocation4]
    $region5: #{tpu_custom_call.1} parent=1 // pred_fallthru
      _
    // Predicated region
    $region6: #{tpu_custom_call.1} parent=1 // pred_check
      _
    $region7: #{tpu_custom_call.1} parent=1 // pred_check_branch
      %36 = sbr.rel (0) target = $region9
    $region8: #{tpu_custom_call.1} parent=1 // pred_region
      %s38 = ssub.s32 128, 128
      %39 = vsyncadd [#allocation7], %s38
      %s41 = sshll.u32 [#allocation6], 4
      %s42 = int_to_ptr.vmem [resolvable:$true] %s41
      %44 = dma.hbm_to_vmem [thread:$0]  %s1, 128, %s42, [#allocation7]
    $region9: #{tpu_custom_call.1} parent=1 // pred_fallthru
      _
    // Predicated region
    $region10: #{tpu_custom_call.1} parent=1 // pred_check
      _
    $region11: #{tpu_custom_call.1} parent=1 // pred_check_branch
      %46 = sbr.rel (0) target = $region13
    $region12: #{tpu_custom_call.1} parent=1 // pred_region
      %s48 = ssub.s32 512, 512
      %49 = vsyncadd [#allocation7], %s48
      %s50 = sshll.u32 [#allocation8], 4
      %s51 = int_to_ptr.vmem [resolvable:$true] %s50
      %56 = dma.hbm_to_vmem [thread:$0]  %s2, 512, %s51, [#allocation7], 128, 128, 8
    $region13: #{tpu_custom_call.1} parent=1 // pred_fallthru
      _
    // Predicated region
    $region14: #{tpu_custom_call.1} parent=1 // pred_check
      _
    $region15: #{tpu_custom_call.1} parent=1 // pred_check_branch
      %58 = sbr.rel (0) target = $region17
    $region16: #{tpu_custom_call.1} parent=1 // pred_region
      _
    $region17: #{tpu_custom_call.1} parent=1 // pred_fallthru
      _
    // Predicated region
    $region18: #{tpu_custom_call.1} parent=1 // pred_check
      _
    $region19: #{tpu_custom_call.1} parent=1 // pred_check_branch
      %60 = sbr.rel (0) target = $region21
    $region20: #{tpu_custom_call.1} parent=1 // pred_region
      %s62 = ssub.s32 2048, 2048
      %63 = vsyncadd [#allocation10], %s62
      %s64 = sshll.u32 [#allocation9], 4
      %s65 = int_to_ptr.vmem [resolvable:$true] %s64
      %70 = dma.hbm_to_vmem [thread:$0]  %s4, 2048, %s65, [#allocation10], 128, 128, 8
    $region21: #{tpu_custom_call.1} parent=1 // pred_fallthru
      _
    // Predicated region
    $region22: #{tpu_custom_call.1} parent=1 // pred_check
      _
    $region23: #{tpu_custom_call.1} parent=1 // pred_check_branch
      %72 = sbr.rel (0) target = $region25
    $region24: #{tpu_custom_call.1} parent=1 // pred_region
      _
    $region25: #{tpu_custom_call.1} parent=1 // pred_fallthru
      _
    // Predicated region
    $region26: #{tpu_custom_call.1} parent=1 // pred_check
      _
    $region27: #{tpu_custom_call.1} parent=1 // pred_check_branch
      %74 = sbr.rel (0) target = $region29
    $region28: #{tpu_custom_call.1} parent=1 // pred_region
      %s76 = ssub.s32 2048, 2048
      %77 = vsyncadd [#allocation10], %s76
      %s78 = sshll.u32 [#allocation11], 4
      %s79 = int_to_ptr.vmem [resolvable:$true] %s78
      %84 = dma.hbm_to_vmem [thread:$0]  %s6, 2048, %s79, [#allocation10], 128, 128, 8
    $region29: #{tpu_custom_call.1} parent=1 // pred_fallthru
      _
    // Predicated region
    $region30: #{tpu_custom_call.1} parent=1 // pred_check
      _
    $region31: #{tpu_custom_call.1} parent=1 // pred_check_branch
      %86 = sbr.rel (0) target = $region33
    $region32: #{tpu_custom_call.1} parent=1 // pred_region
      _
    $region33: #{tpu_custom_call.1} parent=1 // pred_fallthru
      _
    // Predicated region
    $region34: #{tpu_custom_call.1} parent=1 // pred_check
      _
    $region35: #{tpu_custom_call.1} parent=1 // pred_check_branch
      %88 = sbr.rel (0) target = $region37
    $region36: #{tpu_custom_call.1} parent=1 // pred_region
      _
    $region37: #{tpu_custom_call.1} parent=1 // pred_fallthru
      _
    // Predicated region
    $region38: #{tpu_custom_call.1} parent=1 // pred_check
      _
    $region39: #{tpu_custom_call.1} parent=1 // pred_check_branch
      %90 = sbr.rel (0) target = $region41
    $region40: #{tpu_custom_call.1} parent=1 // pred_region
      _
    $region41: #{tpu_custom_call.1} parent=1 // pred_fallthru
      _
    // Predicated region
    $region42: #{tpu_custom_call.1} parent=1 // pred_check
      _
    $region43: #{tpu_custom_call.1} parent=1 // pred_check_branch
      %92 = sbr.rel (0) target = $region45
    $region44: #{tpu_custom_call.1} parent=1 // pred_region
      %93 = dma.done [#allocation4], 128
    $region45: #{tpu_custom_call.1} parent=1 // pred_fallthru
      _
    // Predicated region
    $region46: #{tpu_custom_call.1} parent=1 // pred_check
      _
    $region47: #{tpu_custom_call.1} parent=1 // pred_check_branch
      %95 = sbr.rel (0) target = $region49
    $region48: #{tpu_custom_call.1} parent=1 // pred_region
      %96 = dma.done [#allocation7], 128
    $region49: #{tpu_custom_call.1} parent=1 // pred_fallthru
      _
    // Predicated region
    $region50: #{tpu_custom_call.1} parent=1 // pred_check
      _
    $region51: #{tpu_custom_call.1} parent=1 // pred_check_branch
      %98 = sbr.rel (0) target = $region53
    $region52: #{tpu_custom_call.1} parent=1 // pred_region
      %99 = dma.done [#allocation7], 512
    $region53: #{tpu_custom_call.1} parent=1 // pred_fallthru
      _
    // Predicated region
    $region54: #{tpu_custom_call.1} parent=1 // pred_check
      _
    $region55: #{tpu_custom_call.1} parent=1 // pred_check_branch
      %101 = sbr.rel (0) target = $region57
    $region56: #{tpu_custom_call.1} parent=1 // pred_region
      %102 = dma.done [#allocation10], 2048
    $region57: #{tpu_custom_call.1} parent=1 // pred_fallthru
      _
    // Predicated region
    $region58: #{tpu_custom_call.1} parent=1 // pred_check
      _
    $region59: #{tpu_custom_call.1} parent=1 // pred_check_branch
      %104 = sbr.rel (0) target = $region61
    $region60: #{tpu_custom_call.1} parent=1 // pred_region
      %105 = dma.done [#allocation10], 2048
    $region61: #{tpu_custom_call.1} parent=1 // pred_fallthru
      _
    %v106 = vld [vmem:[#allocation3] sm:$0xff]
    %v107 = vld [vmem:[#allocation6] sm:$0xff]
    %v108 = vld [vmem:[#allocation8] sm:$0xff]
    %v109 = vld [vmem:[#allocation8 + $0x8] sm:$0xff]
    %v110 = vld [vmem:[#allocation8 + $0x10] sm:$0xff]
    %v111 = vld [vmem:[#allocation8 + $0x18] sm:$0xff]
    %v112 = vld [vmem:[%s3] sm:$0x1]
    %v114 = vlaneseq
    %v115 = vshrl.u32 %v114, 7
    %v116 = vsub.s32 0, %v115
    %v117 = vrot.slane %v112, %v116
    %vm119 = vcmask 261120
    %v121 = vsel %vm119, %v106, 0
    %v124 = vsel %vm119, %v107, 0
    %126 = vmatprep.subr.mxu0 0.0
    %127 = vmatpush1.msra.mxu0 %v108
    %128 = vmatprep.subr.mxu0 0.0
    %129 = vmatpush1.msra.mxu0 %v109
    %130 = vmatprep.subr.mxu0 0.0
    %131 = vmatpush1.msra.mxu0 %v110
    %132 = vmatprep.subr.mxu0 0.0
    %133 = vmatpush1.msra.mxu0 %v111
    %134 = vmatprep.subr.mxu0 0.0
    %135 = vmatpush1.msra.mxu0 0.0
    %136 = vmatprep.subr.mxu0 0.0
    %137 = vmatpush1.msra.mxu0 0.0
    %138 = vmatprep.subr.mxu0 0.0
    %139 = vmatpush1.msra.mxu0 0.0
    %140 = vmatprep.subr.mxu0 0.0
    %141 = vmatpush1.msra.mxu0 0.0
    %142 = vmatprep.subr.mxu0 0.0
    %143 = vmatpush1.msra.mxu0 0.0
    %144 = vmatprep.subr.mxu0 0.0
    %145 = vmatpush1.msra.mxu0 0.0
    %146 = vmatprep.subr.mxu0 0.0
    %147 = vmatpush1.msra.mxu0 0.0
    %148 = vmatprep.subr.mxu0 0.0
    %149 = vmatpush1.msra.mxu0 0.0
    %150 = vmatprep.subr.mxu0 0.0
    %151 = vmatpush1.msra.mxu0 0.0
    %152 = vmatprep.subr.mxu0 0.0
    %153 = vmatpush1.msra.mxu0 0.0
    %154 = vmatprep.subr.mxu0 0.0
    %155 = vmatpush1.msra.mxu0 0.0
    %156 = vmatprep.subr.mxu0 0.0
    %157 = vmatpush1.msra.mxu0 0.0
    %158 = vmatprep.subr.mxu0 0.0
    %159 = vmatpush1.msra.mxu0 0.0
    %160 = vmatprep.subr.mxu0 0.0
    %161 = vmatpush1.msra.mxu0 0.0
    %162 = vmatprep.subr.mxu0 0.0
    %163 = vmatpush1.msra.mxu0 0.0
    %164 = vmatprep.subr.mxu0 0.0
    %165 = vmatpush1.msra.mxu0 0.0
    %166 = vmatprep.subr.mxu0 0.0
    %167 = vmatpush1.msra.mxu0 0.0
    %168 = vmatprep.subr.mxu0 0.0
    %169 = vmatpush1.msra.mxu0 0.0
    %170 = vmatprep.subr.mxu0 0.0
    %171 = vmatpush1.msra.mxu0 0.0
    %172 = vmatprep.subr.mxu0 0.0
    %173 = vmatpush1.msra.mxu0 0.0
    %174 = vmatprep.subr.mxu0 0.0
    %175 = vmatpush1.msra.mxu0 0.0
    %176 = vmatprep.subr.mxu0 0.0
    %177 = vmatpush1.msra.mxu0 0.0
    %178 = vmatprep.subr.mxu0 0.0
    %179 = vmatpush1.msra.mxu0 0.0
    %180 = vmatprep.subr.mxu0 0.0
    %181 = vmatpush1.msra.mxu0 0.0
    %182 = vmatprep.subr.mxu0 0.0
    %183 = vmatpush1.msra.mxu0 0.0
    %184 = vmatprep.subr.mxu0 0.0
    %185 = vmatpush1.msra.mxu0 0.0
    %186 = vmatprep.subr.mxu0 0.0
    %187 = vmatpush1.msra.mxu0 0.0
    %188 = vmatprep.subr.mxu0 0.0
    %189 = vmatpush1.msra.mxu0 0.0
    %190 = vmatprep.mubr.f32.mxu0 0.0
    %191 = vmatmul.mubr.f32.gmra.mrb[0].mxu0 %v121
    %v192 = vpop.f32.mrb[0].mxu0
    %v193 = vadd.f32 %v117, %v192
    %v194 = vpop.f32.mrb[0].mxu0
    %195 = vmatprep.mubr.f32.mxu0 0.0
    %196 = vmatmul.mubr.f32.gmra.mrb[0].mxu0 %v124
    %v197 = vpop.f32.mrb[0].mxu0
    %v198 = vadd.f32 %v117, %v197
    %v199 = vpop.f32.mrb[0].mxu0
    %200 = vdwg.mxu0
    %vm201 = vcmask 523264
    %202 = vst.msk [vmem:[#allocation12] sm:$0xff] %vm201, %v193
    %203 = vst.msk [vmem:[#allocation13] sm:$0xff] %vm201, %v198
    %v204 = vld [vmem:[#allocation9] sm:$0xff]
    %v205 = vld [vmem:[#allocation9 + $0x8] sm:$0xff]
    %v206 = vld [vmem:[#allocation9 + $0x10] sm:$0xff]
    %v207 = vld [vmem:[#allocation9 + $0x18] sm:$0xff]
    %v208 = vld [vmem:[#allocation9 + $0x20] sm:$0xff]
    %v209 = vld [vmem:[#allocation9 + $0x28] sm:$0xff]
    %v210 = vld [vmem:[#allocation9 + $0x30] sm:$0xff]
    %v211 = vld [vmem:[#allocation9 + $0x38] sm:$0xff]
    %v212 = vld [vmem:[#allocation9 + $0x40] sm:$0xff]
    %v213 = vld [vmem:[#allocation9 + $0x48] sm:$0xff]
    %v214 = vld [vmem:[#allocation9 + $0x50] sm:$0xff]
    %v215 = vld [vmem:[#allocation9 + $0x58] sm:$0xff]
    %v216 = vld [vmem:[#allocation9 + $0x60] sm:$0xff]
    %v217 = vld [vmem:[#allocation9 + $0x68] sm:$0xff]
    %v218 = vld [vmem:[#allocation9 + $0x70] sm:$0xff]
    %v219 = vld [vmem:[#allocation9 + $0x78] sm:$0xff]
    %v221 = vsel %vm201, %v198, 0
    %223 = vmatprep.subr.mxu0 0.0
    %224 = vmatpush1.msra.mxu0 %v212
    %225 = vmatprep.subr.mxu0 0.0
    %226 = vmatpush1.msra.mxu0 %v213
    %227 = vmatprep.subr.mxu0 0.0
    %228 = vmatpush1.msra.mxu0 %v214
    %229 = vmatprep.subr.mxu0 0.0
    %230 = vmatpush1.msra.mxu0 %v215
    %231 = vmatprep.subr.mxu0 0.0
    %232 = vmatpush1.msra.mxu0 %v216
    %233 = vmatprep.subr.mxu0 0.0
    %234 = vmatpush1.msra.mxu0 %v217
    %235 = vmatprep.subr.mxu0 0.0
    %236 = vmatpush1.msra.mxu0 %v218
    %237 = vmatprep.subr.mxu0 0.0
    %238 = vmatpush1.msra.mxu0 %v219
    %239 = vmatprep.subr.mxu0 0.0
    %240 = vmatpush1.msra.mxu0 0.0
    %241 = vmatprep.subr.mxu0 0.0
    %242 = vmatpush1.msra.mxu0 0.0
    %243 = vmatprep.subr.mxu0 0.0
    %244 = vmatpush1.msra.mxu0 0.0
    %245 = vmatprep.subr.mxu0 0.0
    %246 = vmatpush1.msra.mxu0 0.0
    %247 = vmatprep.subr.mxu0 0.0
    %248 = vmatpush1.msra.mxu0 0.0
    %249 = vmatprep.subr.mxu0 0.0
    %250 = vmatpush1.msra.mxu0 0.0
    %251 = vmatprep.subr.mxu0 0.0
    %252 = vmatpush1.msra.mxu0 0.0
    %253 = vmatprep.subr.mxu0 0.0
    %254 = vmatpush1.msra.mxu0 0.0
    %255 = vmatprep.subr.mxu0 0.0
    %256 = vmatpush1.msra.mxu0 0.0
    %257 = vmatprep.subr.mxu0 0.0
    %258 = vmatpush1.msra.mxu0 0.0
    %259 = vmatprep.subr.mxu0 0.0
    %260 = vmatpush1.msra.mxu0 0.0
    %261 = vmatprep.subr.mxu0 0.0
    %262 = vmatpush1.msra.mxu0 0.0
    %263 = vmatprep.subr.mxu0 0.0
    %264 = vmatpush1.msra.mxu0 0.0
    %265 = vmatprep.subr.mxu0 0.0
    %266 = vmatpush1.msra.mxu0 0.0
    %267 = vmatprep.subr.mxu0 0.0
    %268 = vmatpush1.msra.mxu0 0.0
    %269 = vmatprep.subr.mxu0 0.0
    %270 = vmatpush1.msra.mxu0 0.0
    %271 = vmatprep.subr.mxu0 0.0
    %272 = vmatpush1.msra.mxu0 0.0
    %273 = vmatprep.subr.mxu0 0.0
    %274 = vmatpush1.msra.mxu0 0.0
    %275 = vmatprep.subr.mxu0 0.0
    %276 = vmatpush1.msra.mxu0 0.0
    %277 = vmatprep.subr.mxu0 0.0
    %278 = vmatpush1.msra.mxu0 0.0
    %279 = vmatprep.subr.mxu0 0.0
    %280 = vmatpush1.msra.mxu0 0.0
    %281 = vmatprep.subr.mxu0 0.0
    %282 = vmatpush1.msra.mxu0 0.0
    %283 = vmatprep.subr.mxu0 0.0
    %284 = vmatpush1.msra.mxu0 0.0
    %285 = vmatprep.subr.mxu0 0.0
    %286 = vmatpush1.msra.mxu0 0.0
    %287 = vmatprep.mubr.f32.mxu0 0.0
    %288 = vmatmul.mubr.f32.gmra.mrb[0].mxu0 %v221
    %v289 = vpop.f32.mrb[0].mxu0
    %v290 = vadd.f32 0.0, %v289
    %v291 = vpop.f32.mrb[0].mxu0
    %292 = vdwg.mxu0
    %v294 = vsel %vm201, %v193, 0
    %296 = vmatprep.subr.mxu0 0.0
    %297 = vmatpush1.msra.mxu0 %v204
    %298 = vmatprep.subr.mxu0 0.0
    %299 = vmatpush1.msra.mxu0 %v205
    %300 = vmatprep.subr.mxu0 0.0
    %301 = vmatpush1.msra.mxu0 %v206
    %302 = vmatprep.subr.mxu0 0.0
    %303 = vmatpush1.msra.mxu0 %v207
    %304 = vmatprep.subr.mxu0 0.0
    %305 = vmatpush1.msra.mxu0 %v208
    %306 = vmatprep.subr.mxu0 0.0
    %307 = vmatpush1.msra.mxu0 %v209
    %308 = vmatprep.subr.mxu0 0.0
    %309 = vmatpush1.msra.mxu0 %v210
    %310 = vmatprep.subr.mxu0 0.0
    %311 = vmatpush1.msra.mxu0 %v211
    %312 = vmatprep.subr.mxu0 0.0
    %313 = vmatpush1.msra.mxu0 0.0
    %314 = vmatprep.subr.mxu0 0.0
    %315 = vmatpush1.msra.mxu0 0.0
    %316 = vmatprep.subr.mxu0 0.0
    %317 = vmatpush1.msra.mxu0 0.0
    %318 = vmatprep.subr.mxu0 0.0
    %319 = vmatpush1.msra.mxu0 0.0
    %320 = vmatprep.subr.mxu0 0.0
    %321 = vmatpush1.msra.mxu0 0.0
    %322 = vmatprep.subr.mxu0 0.0
    %323 = vmatpush1.msra.mxu0 0.0
    %324 = vmatprep.subr.mxu0 0.0
    %325 = vmatpush1.msra.mxu0 0.0
    %326 = vmatprep.subr.mxu0 0.0
    %327 = vmatpush1.msra.mxu0 0.0
    %328 = vmatprep.subr.mxu0 0.0
    %329 = vmatpush1.msra.mxu0 0.0
    %330 = vmatprep.subr.mxu0 0.0
    %331 = vmatpush1.msra.mxu0 0.0
    %332 = vmatprep.subr.mxu0 0.0
    %333 = vmatpush1.msra.mxu0 0.0
    %334 = vmatprep.subr.mxu0 0.0
    %335 = vmatpush1.msra.mxu0 0.0
    %336 = vmatprep.subr.mxu0 0.0
    %337 = vmatpush1.msra.mxu0 0.0
    %338 = vmatprep.subr.mxu0 0.0
    %339 = vmatpush1.msra.mxu0 0.0
    %340 = vmatprep.subr.mxu0 0.0
    %341 = vmatpush1.msra.mxu0 0.0
    %342 = vmatprep.subr.mxu0 0.0
    %343 = vmatpush1.msra.mxu0 0.0
    %344 = vmatprep.subr.mxu0 0.0
    %345 = vmatpush1.msra.mxu0 0.0
    %346 = vmatprep.subr.mxu0 0.0
    %347 = vmatpush1.msra.mxu0 0.0
    %348 = vmatprep.subr.mxu0 0.0
    %349 = vmatpush1.msra.mxu0 0.0
    %350 = vmatprep.subr.mxu0 0.0
    %351 = vmatpush1.msra.mxu0 0.0
    %352 = vmatprep.subr.mxu0 0.0
    %353 = vmatpush1.msra.mxu0 0.0
    %354 = vmatprep.subr.mxu0 0.0
    %355 = vmatpush1.msra.mxu0 0.0
    %356 = vmatprep.subr.mxu0 0.0
    %357 = vmatpush1.msra.mxu0 0.0
    %358 = vmatprep.subr.mxu0 0.0
    %359 = vmatpush1.msra.mxu0 0.0
    %360 = vmatprep.mubr.f32.mxu0 0.0
    %361 = vmatmul.mubr.f32.gmra.mrb[0].mxu0 %v294
    %v362 = vpop.f32.mrb[0].mxu0
    %v363 = vadd.f32 %v290, %v362
    %v364 = vpop.f32.mrb[0].mxu0
    %365 = vdwg.mxu0
    %v366 = vld [vmem:[%s5] sm:$0x1]
    %v368 = vlaneseq
    %v369 = vshrl.u32 %v368, 7
    %v370 = vsub.s32 0, %v369
    %v371 = vrot.slane %v366, %v370
    %v373 = vadd.f32 %v363, %v371
    %v374 = vmax.f32 %v373, 0.0
    %v375 = vld [vmem:[#allocation11] sm:$0xff]
    %v376 = vld [vmem:[#allocation11 + $0x8] sm:$0xff]
    %v377 = vld [vmem:[#allocation11 + $0x10] sm:$0xff]
    %v378 = vld [vmem:[#allocation11 + $0x18] sm:$0xff]
    %v379 = vld [vmem:[#allocation11 + $0x20] sm:$0xff]
    %v380 = vld [vmem:[#allocation11 + $0x28] sm:$0xff]
    %v381 = vld [vmem:[#allocation11 + $0x30] sm:$0xff]
    %v382 = vld [vmem:[#allocation11 + $0x38] sm:$0xff]
    %v383 = vld [vmem:[#allocation11 + $0x40] sm:$0xff]
    %v384 = vld [vmem:[#allocation11 + $0x48] sm:$0xff]
    %v385 = vld [vmem:[#allocation11 + $0x50] sm:$0xff]
    %v386 = vld [vmem:[#allocation11 + $0x58] sm:$0xff]
    %v387 = vld [vmem:[#allocation11 + $0x60] sm:$0xff]
    %v388 = vld [vmem:[#allocation11 + $0x68] sm:$0xff]
    %v389 = vld [vmem:[#allocation11 + $0x70] sm:$0xff]
    %v390 = vld [vmem:[#allocation11 + $0x78] sm:$0xff]
    %v391 = vld [vmem:[%s7] sm:$0x1]
    %v393 = vlaneseq
    %v394 = vshrl.u32 %v393, 7
    %v395 = vsub.s32 0, %v394
    %v396 = vrot.slane %v391, %v395
    %398 = vmatprep.subr.mxu0 0.0
    %399 = vmatpush1.msra.mxu0 %v375
    %400 = vmatprep.subr.mxu0 0.0
    %401 = vmatpush1.msra.mxu0 %v376
    %402 = vmatprep.subr.mxu0 0.0
    %403 = vmatpush1.msra.mxu0 %v377
    %404 = vmatprep.subr.mxu0 0.0
    %405 = vmatpush1.msra.mxu0 %v378
    %406 = vmatprep.subr.mxu0 0.0
    %407 = vmatpush1.msra.mxu0 %v379
    %408 = vmatprep.subr.mxu0 0.0
    %409 = vmatpush1.msra.mxu0 %v380
    %410 = vmatprep.subr.mxu0 0.0
    %411 = vmatpush1.msra.mxu0 %v381
    %412 = vmatprep.subr.mxu0 0.0
    %413 = vmatpush1.msra.mxu0 %v382
    %414 = vmatprep.subr.mxu0 0.0
    %415 = vmatpush1.msra.mxu0 %v383
    %416 = vmatprep.subr.mxu0 0.0
    %417 = vmatpush1.msra.mxu0 %v384
    %418 = vmatprep.subr.mxu0 0.0
    %419 = vmatpush1.msra.mxu0 %v385
    %420 = vmatprep.subr.mxu0 0.0
    %421 = vmatpush1.msra.mxu0 %v386
    %422 = vmatprep.subr.mxu0 0.0
    %423 = vmatpush1.msra.mxu0 %v387
    %424 = vmatprep.subr.mxu0 0.0
    %425 = vmatpush1.msra.mxu0 %v388
    %426 = vmatprep.subr.mxu0 0.0
    %427 = vmatpush1.msra.mxu0 %v389
    %428 = vmatprep.subr.mxu0 0.0
    %429 = vmatpush1.msra.mxu0 %v390
    %430 = vmatprep.subr.mxu0 0.0
    %431 = vmatpush1.msra.mxu0 0.0
    %432 = vmatprep.subr.mxu0 0.0
    %433 = vmatpush1.msra.mxu0 0.0
    %434 = vmatprep.subr.mxu0 0.0
    %435 = vmatpush1.msra.mxu0 0.0
    %436 = vmatprep.subr.mxu0 0.0
    %437 = vmatpush1.msra.mxu0 0.0
    %438 = vmatprep.subr.mxu0 0.0
    %439 = vmatpush1.msra.mxu0 0.0
    %440 = vmatprep.subr.mxu0 0.0
    %441 = vmatpush1.msra.mxu0 0.0
    %442 = vmatprep.subr.mxu0 0.0
    %443 = vmatpush1.msra.mxu0 0.0
    %444 = vmatprep.subr.mxu0 0.0
    %445 = vmatpush1.msra.mxu0 0.0
    %446 = vmatprep.subr.mxu0 0.0
    %447 = vmatpush1.msra.mxu0 0.0
    %448 = vmatprep.subr.mxu0 0.0
    %449 = vmatpush1.msra.mxu0 0.0
    %450 = vmatprep.subr.mxu0 0.0
    %451 = vmatpush1.msra.mxu0 0.0
    %452 = vmatprep.subr.mxu0 0.0
    %453 = vmatpush1.msra.mxu0 0.0
    %454 = vmatprep.subr.mxu0 0.0
    %455 = vmatpush1.msra.mxu0 0.0
    %456 = vmatprep.subr.mxu0 0.0
    %457 = vmatpush1.msra.mxu0 0.0
    %458 = vmatprep.subr.mxu0 0.0
    %459 = vmatpush1.msra.mxu0 0.0
    %460 = vmatprep.subr.mxu0 0.0
    %461 = vmatpush1.msra.mxu0 0.0
    %462 = vmatprep.mubr.f32.mxu0 0.0
    %463 = vmatmul.mubr.f32.gmra.mrb[0].mxu0 %v374
    %v464 = vpop.f32.mrb[0].mxu0
    %v465 = vadd.f32 %v396, %v464
    %v466 = vpop.f32.mrb[0].mxu0
    %467 = vdwg.mxu0
    %v468 = vmax.f32 %v465, 0.0
    %v469 = vld [vmem:[%s8] sm:$0x1]
    %v471 = vlaneseq
    %v472 = vshrl.u32 %v471, 7
    %v473 = vsub.s32 0, %v472
    %v474 = vrot.slane %v469, %v473
    %v476 = vmul.f32 %v468, %v474
    %477 = vadd.xlane.f32.xlu0 %v476
    %v478 = vpop.xlane.xlu0 %477
    %v479 = vld [vmem:[#allocation2] sm:$0x1]
    %v481 = vlaneseq
    %v482 = vshrl.u32 %v481, 7
    %v483 = vsub.s32 0, %v482
    %v484 = vrot.slane %v479, %v483
    %v486 = vadd.f32 %v478, %v484
    %v487 = vmul.f32 %v486, 0.5
    %v488 = vtanh.pop %v487
    %v489 = vadd.f32 %v488, 1.0
    %v490 = vmul.f32 %v489, 0.5
    %vm491 = vcmask 7168
    %492 = vst.msk [vmem:[%s10] sm:$0xff] %vm491, %v490
    // Predicated region
    $region62: #{tpu_custom_call.1} parent=1 // pred_check
      _
    $region63: #{tpu_custom_call.1} parent=1 // pred_check_branch
      %494 = sbr.rel (0) target = $region65
    $region64: #{tpu_custom_call.1} parent=1 // pred_region
      _
    $region65: #{tpu_custom_call.1} parent=1 // pred_fallthru
      _
    // Predicated region
    $region66: #{tpu_custom_call.1} parent=1 // pred_check
      _
    $region67: #{tpu_custom_call.1} parent=1 // pred_check_branch
      %496 = sbr.rel (0) target = $region69
    $region68: #{tpu_custom_call.1} parent=1 // pred_region
      %s498 = ssub.s32 128, 128
      %499 = vsyncadd [#allocation5], %s498
      %s501 = sshll.u32 [#allocation12], 4
      %s502 = int_to_ptr.vmem [resolvable:$true] %s501
      %504 = dma.vmem_to_hbm [thread:$0]  %s502, 128, %s11, [#allocation5]
    $region69: #{tpu_custom_call.1} parent=1 // pred_fallthru
      _
    // Predicated region
    $region70: #{tpu_custom_call.1} parent=1 // pred_check
      _
    $region71: #{tpu_custom_call.1} parent=1 // pred_check_branch
      %506 = sbr.rel (0) target = $region73
    $region72: #{tpu_custom_call.1} parent=1 // pred_region
      %s508 = ssub.s32 128, 128
      %509 = vsyncadd [#allocation14], %s508
      %s511 = sshll.u32 [#allocation13], 4
      %s512 = int_to_ptr.vmem [resolvable:$true] %s511
      %514 = dma.vmem_to_hbm [thread:$0]  %s512, 128, %s12, [#allocation14]
    $region73: #{tpu_custom_call.1} parent=1 // pred_fallthru
      _
    // Predicated region
    $region74: #{tpu_custom_call.1} parent=1 // pred_check
      _
    $region75: #{tpu_custom_call.1} parent=1 // pred_check_branch
      %516 = sbr.rel (0) target = $region77
    $region76: #{tpu_custom_call.1} parent=1 // pred_region
      _
    $region77: #{tpu_custom_call.1} parent=1 // pred_fallthru
      _
    // Predicated region
    $region78: #{tpu_custom_call.1} parent=1 // pred_check
      _
    $region79: #{tpu_custom_call.1} parent=1 // pred_check_branch
      %518 = sbr.rel (0) target = $region81
    $region80: #{tpu_custom_call.1} parent=1 // pred_region
      %519 = dma.done [#allocation5], 128
    $region81: #{tpu_custom_call.1} parent=1 // pred_fallthru
      _
    // Predicated region
    $region82: #{tpu_custom_call.1} parent=1 // pred_check
      _
    $region83: #{tpu_custom_call.1} parent=1 // pred_check_branch
      %521 = sbr.rel (0) target = $region85
    $region84: #{tpu_custom_call.1} parent=1 // pred_region
      %522 = dma.done [#allocation14], 128
    $region85: #{tpu_custom_call.1} parent=1 // pred_fallthru
      _
    %523 = vsyncpa [#allocation4], 1
    %524 = vsyncpa [#allocation7], 1
    %525 = vsyncpa [#allocation10], 1
    %526 = vsyncpa [#allocation5], 1
    %527 = vsyncpa [#allocation14], 1

</llo_original>
